<compile_context>
chip_gen: v7x
topology: tpu7x:2x2x1
jax: 0.10.0
libtpu: 0.0.40
codegen_flags: <defaults>
</compile_context>

<pallas_src>
import numpy as np
import jax
import jax.numpy as jnp
from jax import lax
from jax.experimental import pallas as pl
from jax.experimental.pallas import tpu as pltpu


def _cdiv(a, b):
    return -(-a // b)


def _round_up(a, m):
    return ((a + m - 1) // m) * m


def _choose_lane_width(PC, HW):
    """Lane width L: a multiple-of-128 divisor of HW.  Prefer an L that makes
    R = PC*HW/L a multiple of 8 (no sublane padding), then prefer wider L.
    If HW is not a multiple of 128, fall back to the full HW lane dim (legal
    because a block dim equal to the full array dim is always allowed)."""
    if HW % 128 != 0:
        return HW
    cands = [c for c in (1024, 512, 256, 128) if HW % c == 0]
    for c in cands:
        if (PC * (HW // c)) % 8 == 0:
            return c
    return cands[0]


def _choose_tiling(B, T, PC, HW, itemsize, budget_bytes):
    """Pick (L, R, tR, cR, n_r):
       L  : lane width of the (R, L) re-view of (PC, HW)
       R  : number of rows (= PC * HW / L)
       tR : rows per grid block (multiple of the native sublane tile, or full R)
       cR : rows per in-kernel register-resident accumulator chunk (divides tR)
       n_r: number of row blocks (cdiv grid; edge block masked)."""
    L = _choose_lane_width(PC, HW)
    R = PC * (HW // L)
    sub = max(8, 32 // itemsize)              # native sublane tile rows
    if R <= sub:
        return L, R, R, R, 1                  # one tiny full block, one chunk

    # Register-resident accumulator chunk: cR * L f32 ~ 32 KiB (~8 vregs).
    # NOTE: if HW is huge and not a multiple of 128 (fallback L = HW), the
    # per-chunk accumulator may exceed the register file; correctness holds.
    cR = max(sub, min(64, ((8192 // L) // sub) * sub))

    # Double-buffered x + out (+ tiny f32 weight) bytes per R row.
    bytes_per_row = 2 * L * itemsize * (T + 1) + 2 * 4 * T
    max_rows = max(sub, ((budget_bytes // bytes_per_row) // sub) * sub)

    # Keep >= 4 total grid steps (2 blocks per v7x TensorCore; enough steps for
    # double-buffering on single-TC v5e/v6e).
    rows_for_min_steps = max(sub, _round_up(_cdiv(R, max(1, _cdiv(4, B))), sub))

    tR = min(_round_up(R, sub), max_rows, rows_for_min_steps)
    cR = min(cR, tR)
    tR = (tR // cR) * cR                      # chunks tile the block exactly
    n_r = _cdiv(R, tR)
    return L, R, tR, cR, n_r


def _make_temporal_reduce_kernel(T, cR, n_chunks):
    def accumulate(x_ref, w_ref, o_ref, rows):
        # One register-resident f32 accumulator per chunk; T fully unrolled.
        acc = x_ref[0, 0, rows, :].astype(jnp.float32) * w_ref[0, rows, :]
        for t in range(1, T):
            acc = acc + x_ref[0, t, rows, :].astype(jnp.float32) * w_ref[t, rows, :]
        o_ref[0, rows, :] = acc.astype(o_ref.dtype)

    def kernel(x_ref, w_ref, o_ref):
        # x_ref: (1, T, tR, L)   w_ref: (T, tR, 1) f32   o_ref: (1, tR, L)
        if n_chunks == 1:
            accumulate(x_ref, w_ref, o_ref, slice(None))
        else:
            def chunk(i, carry):
                r0 = pl.multiple_of(i * cR, cR)
                accumulate(x_ref, w_ref, o_ref, pl.ds(r0, cR))
                return carry
            lax.fori_loop(0, n_chunks, chunk, 0)

    return kernel


def triplane_temporal_reduce(x, weight, *, vmem_budget_bytes=24 * 1024 * 1024):
    """x: (B, T, P, C, H, W); weight: (P*C, T) depthwise temporal taps.

    Returns (B, 1, P, C, H, W), matching the PyTorch module output.
    x may be f32 or bf16; accumulation is always f32.
    """
    B, T, P, C, H, W = x.shape
    PC, HW = P * C, H * W
    assert weight.shape == (PC, T), f"weight must be ({PC},{T}), got {weight.shape}"

    itemsize = x.dtype.itemsize
    L, R, tR, cR, n_r = _choose_tiling(B, T, PC, HW, itemsize, vmem_budget_bytes)
    n_chunks = tR // cR

    # Pure contiguous re-views (no data movement): (P,C,H,W) flattens straight
    # into (R, L) because L divides HW; row r maps to channel pc = r // (HW//L).
    x_rl = x.reshape(B, T, R, L)
    rep = HW // L
    w_rl = jnp.repeat(jnp.transpose(weight).astype(jnp.float32), rep,
                      axis=1).reshape(T, R, 1)

    kernel = _make_temporal_reduce_kernel(T, cR, n_chunks)

    bytes_accessed = (x.size * itemsize            # x read
                      + T * R * 4                  # weight read
                      + B * R * L * itemsize)      # output write
    cost = pl.CostEstimate(flops=2 * B * T * PC * HW,
                           transcendentals=0,
                           bytes_accessed=bytes_accessed)

    out_rl = pl.pallas_call(
        kernel,
        out_shape=jax.ShapeDtypeStruct((B, R, L), x.dtype),
        grid=(B, n_r),
        in_specs=[
            # x: one batch, full T, a row tile, full lanes — each (b, t) slab is
            # one contiguous HBM chunk.
            pl.BlockSpec((1, T, tR, L), lambda b, r: (b, 0, r, 0)),
            # weight taps for this row tile (tiny, f32).
            pl.BlockSpec((T, tR, 1), lambda b, r: (0, r, 0)),
        ],
        out_specs=pl.BlockSpec((1, tR, L), lambda b, r: (b, r, 0)),
        compiler_params=pltpu.CompilerParams(
            # Every (b, r) grid point writes a distinct output block.
            dimension_semantics=("parallel", "parallel"),
            # 24 MiB of double-buffered pipeline state + headroom; legal on
            # v5e (128 MiB phys), v6e (128 MiB), and v7x (64 MiB phys).
            vmem_limit_bytes=40 * 1024 * 1024,
        ),
        cost_estimate=cost,
    )(x_rl, w_rl)

    return out_rl.reshape(B, 1, P, C, H, W)


def _reference(x, weight):
    # Pure elementwise f32 reference (avoids dot_general default-precision
    # surprises on TPU).
    B, T, P, C, H, W = x.shape
    w_tpc = jnp.transpose(weight).reshape(T, P, C)      # w_tpc[t,p,c] = W[p*C+c,t]
    return jnp.sum(x * w_tpc[None, :, :, :, None, None], axis=1, keepdims=True)


if __name__ == "__main__":
    key = jax.random.PRNGKey(0)
    k_x, k_w = jax.random.split(key)

    # Small shapes consistent with the module: B=2, T=8, P=3, C=4, H=W=16.
    B, T, P, C, H, W = 2, 8, 3, 4, 16, 16
    x = jax.random.normal(k_x, (B, T, P, C, H, W), dtype=jnp.float32)
    # Deterministic synthetic depthwise-conv weights, shape (3*C, T)
    # (mirrors nn.Conv3d weight (3C, 1, T, 1, 1) squeezed).
    weight = 0.1 * jax.random.normal(k_w, (P * C, T), dtype=jnp.float32)

    out = triplane_temporal_reduce(x, weight)
    out = jax.block_until_ready(out)

    ref = _reference(x, weight)
    assert out.shape == (B, 1, P, C, H, W)
    np.testing.assert_allclose(np.asarray(out), np.asarray(ref),
                               rtol=1e-5, atol=1e-5)
    print("KERNEL_OK")
</pallas_src>

<mosaic_0001>
module attributes {stable_mosaic.version = 11 : i64} {
  func.func @kernel(%arg0: i32, %arg1: i32, %arg2: memref<1x8x16x128xf32, #tpu.memory_space<vmem>>, %arg3: memref<8x16x1xf32, #tpu.memory_space<vmem>>, %arg4: memref<1x16x128xf32, #tpu.memory_space<vmem>>) attributes {dimension_semantics = [#tpu.dimension_semantics<parallel>, #tpu.dimension_semantics<parallel>], iteration_bounds = array<i64: 2, 2>, scalar_prefetch = 0 : i64, scratch_operands = 0 : i64, tpu.core_type = #tpu.core_type<tc>, window_params = [{transform_indices = @transform_0, window_bounds = array<i64: 1, 8, 16, 128>}, {transform_indices = @transform_1, window_bounds = array<i64: 8, 16, 1>}, {transform_indices = @transform_2, window_bounds = array<i64: 1, 16, 128>}]} {
    %c0 = arith.constant 0 : index
    %c0_0 = arith.constant 0 : index
    %c0_1 = arith.constant 0 : index
    %c0_2 = arith.constant 0 : index
    %0 = vector.load %arg2[%c0, %c0_0, %c0_1, %c0_2] : memref<1x8x16x128xf32, #tpu.memory_space<vmem>>, vector<1x1x16x128xf32>
    %1 = vector.shape_cast %0 : vector<1x1x16x128xf32> to vector<16x128xf32>
    %c0_3 = arith.constant 0 : index
    %c0_4 = arith.constant 0 : index
    %c0_5 = arith.constant 0 : index
    %2 = vector.load %arg3[%c0_3, %c0_4, %c0_5] : memref<8x16x1xf32, #tpu.memory_space<vmem>>, vector<1x16x1xf32>
    %3 = vector.shape_cast %2 : vector<1x16x1xf32> to vector<16x1xf32>
    %4 = vector.broadcast %3 : vector<16x1xf32> to vector<16x128xf32>
    %5 = arith.mulf %1, %4 : vector<16x128xf32>
    %c0_6 = arith.constant 0 : index
    %c1 = arith.constant 1 : index
    %c0_7 = arith.constant 0 : index
    %c0_8 = arith.constant 0 : index
    %6 = vector.load %arg2[%c0_6, %c1, %c0_7, %c0_8] : memref<1x8x16x128xf32, #tpu.memory_space<vmem>>, vector<1x1x16x128xf32>
    %7 = vector.shape_cast %6 : vector<1x1x16x128xf32> to vector<16x128xf32>
    %c1_9 = arith.constant 1 : index
    %c0_10 = arith.constant 0 : index
    %c0_11 = arith.constant 0 : index
    %8 = vector.load %arg3[%c1_9, %c0_10, %c0_11] : memref<8x16x1xf32, #tpu.memory_space<vmem>>, vector<1x16x1xf32>
    %9 = vector.shape_cast %8 : vector<1x16x1xf32> to vector<16x1xf32>
    %10 = vector.broadcast %9 : vector<16x1xf32> to vector<16x128xf32>
    %11 = arith.mulf %7, %10 : vector<16x128xf32>
    %12 = arith.addf %5, %11 : vector<16x128xf32>
    %c0_12 = arith.constant 0 : index
    %c2 = arith.constant 2 : index
    %c0_13 = arith.constant 0 : index
    %c0_14 = arith.constant 0 : index
    %13 = vector.load %arg2[%c0_12, %c2, %c0_13, %c0_14] : memref<1x8x16x128xf32, #tpu.memory_space<vmem>>, vector<1x1x16x128xf32>
    %14 = vector.shape_cast %13 : vector<1x1x16x128xf32> to vector<16x128xf32>
    %c2_15 = arith.constant 2 : index
    %c0_16 = arith.constant 0 : index
    %c0_17 = arith.constant 0 : index
    %15 = vector.load %arg3[%c2_15, %c0_16, %c0_17] : memref<8x16x1xf32, #tpu.memory_space<vmem>>, vector<1x16x1xf32>
    %16 = vector.shape_cast %15 : vector<1x16x1xf32> to vector<16x1xf32>
    %17 = vector.broadcast %16 : vector<16x1xf32> to vector<16x128xf32>
    %18 = arith.mulf %14, %17 : vector<16x128xf32>
    %19 = arith.addf %12, %18 : vector<16x128xf32>
    %c0_18 = arith.constant 0 : index
    %c3 = arith.constant 3 : index
    %c0_19 = arith.constant 0 : index
    %c0_20 = arith.constant 0 : index
    %20 = vector.load %arg2[%c0_18, %c3, %c0_19, %c0_20] : memref<1x8x16x128xf32, #tpu.memory_space<vmem>>, vector<1x1x16x128xf32>
    %21 = vector.shape_cast %20 : vector<1x1x16x128xf32> to vector<16x128xf32>
    %c3_21 = arith.constant 3 : index
    %c0_22 = arith.constant 0 : index
    %c0_23 = arith.constant 0 : index
    %22 = vector.load %arg3[%c3_21, %c0_22, %c0_23] : memref<8x16x1xf32, #tpu.memory_space<vmem>>, vector<1x16x1xf32>
    %23 = vector.shape_cast %22 : vector<1x16x1xf32> to vector<16x1xf32>
    %24 = vector.broadcast %23 : vector<16x1xf32> to vector<16x128xf32>
    %25 = arith.mulf %21, %24 : vector<16x128xf32>
    %26 = arith.addf %19, %25 : vector<16x128xf32>
    %c0_24 = arith.constant 0 : index
    %c4 = arith.constant 4 : index
    %c0_25 = arith.constant 0 : index
    %c0_26 = arith.constant 0 : index
    %27 = vector.load %arg2[%c0_24, %c4, %c0_25, %c0_26] : memref<1x8x16x128xf32, #tpu.memory_space<vmem>>, vector<1x1x16x128xf32>
    %28 = vector.shape_cast %27 : vector<1x1x16x128xf32> to vector<16x128xf32>
    %c4_27 = arith.constant 4 : index
    %c0_28 = arith.constant 0 : index
    %c0_29 = arith.constant 0 : index
    %29 = vector.load %arg3[%c4_27, %c0_28, %c0_29] : memref<8x16x1xf32, #tpu.memory_space<vmem>>, vector<1x16x1xf32>
    %30 = vector.shape_cast %29 : vector<1x16x1xf32> to vector<16x1xf32>
    %31 = vector.broadcast %30 : vector<16x1xf32> to vector<16x128xf32>
    %32 = arith.mulf %28, %31 : vector<16x128xf32>
    %33 = arith.addf %26, %32 : vector<16x128xf32>
    %c0_30 = arith.constant 0 : index
    %c5 = arith.constant 5 : index
    %c0_31 = arith.constant 0 : index
    %c0_32 = arith.constant 0 : index
    %34 = vector.load %arg2[%c0_30, %c5, %c0_31, %c0_32] : memref<1x8x16x128xf32, #tpu.memory_space<vmem>>, vector<1x1x16x128xf32>
    %35 = vector.shape_cast %34 : vector<1x1x16x128xf32> to vector<16x128xf32>
    %c5_33 = arith.constant 5 : index
    %c0_34 = arith.constant 0 : index
    %c0_35 = arith.constant 0 : index
    %36 = vector.load %arg3[%c5_33, %c0_34, %c0_35] : memref<8x16x1xf32, #tpu.memory_space<vmem>>, vector<1x16x1xf32>
    %37 = vector.shape_cast %36 : vector<1x16x1xf32> to vector<16x1xf32>
    %38 = vector.broadcast %37 : vector<16x1xf32> to vector<16x128xf32>
    %39 = arith.mulf %35, %38 : vector<16x128xf32>
    %40 = arith.addf %33, %39 : vector<16x128xf32>
    %c0_36 = arith.constant 0 : index
    %c6 = arith.constant 6 : index
    %c0_37 = arith.constant 0 : index
    %c0_38 = arith.constant 0 : index
    %41 = vector.load %arg2[%c0_36, %c6, %c0_37, %c0_38] : memref<1x8x16x128xf32, #tpu.memory_space<vmem>>, vector<1x1x16x128xf32>
    %42 = vector.shape_cast %41 : vector<1x1x16x128xf32> to vector<16x128xf32>
    %c6_39 = arith.constant 6 : index
    %c0_40 = arith.constant 0 : index
    %c0_41 = arith.constant 0 : index
    %43 = vector.load %arg3[%c6_39, %c0_40, %c0_41] : memref<8x16x1xf32, #tpu.memory_space<vmem>>, vector<1x16x1xf32>
    %44 = vector.shape_cast %43 : vector<1x16x1xf32> to vector<16x1xf32>
    %45 = vector.broadcast %44 : vector<16x1xf32> to vector<16x128xf32>
    %46 = arith.mulf %42, %45 : vector<16x128xf32>
    %47 = arith.addf %40, %46 : vector<16x128xf32>
    %c0_42 = arith.constant 0 : index
    %c7 = arith.constant 7 : index
    %c0_43 = arith.constant 0 : index
    %c0_44 = arith.constant 0 : index
    %48 = vector.load %arg2[%c0_42, %c7, %c0_43, %c0_44] : memref<1x8x16x128xf32, #tpu.memory_space<vmem>>, vector<1x1x16x128xf32>
    %49 = vector.shape_cast %48 : vector<1x1x16x128xf32> to vector<16x128xf32>
    %c7_45 = arith.constant 7 : index
    %c0_46 = arith.constant 0 : index
    %c0_47 = arith.constant 0 : index
    %50 = vector.load %arg3[%c7_45, %c0_46, %c0_47] : memref<8x16x1xf32, #tpu.memory_space<vmem>>, vector<1x16x1xf32>
    %51 = vector.shape_cast %50 : vector<1x16x1xf32> to vector<16x1xf32>
    %52 = vector.broadcast %51 : vector<16x1xf32> to vector<16x128xf32>
    %53 = arith.mulf %49, %52 : vector<16x128xf32>
    %54 = arith.addf %47, %53 : vector<16x128xf32>
    %c0_48 = arith.constant 0 : index
    %c0_49 = arith.constant 0 : index
    %c0_50 = arith.constant 0 : index
    %55 = vector.load %arg4[%c0_48, %c0_49, %c0_50] : memref<1x16x128xf32, #tpu.memory_space<vmem>>, vector<1x16x128xf32>
    %56 = vector.shape_cast %55 : vector<1x16x128xf32> to vector<16x128xf32>
    %57 = vector.shape_cast %54 : vector<16x128xf32> to vector<1x16x128xf32>
    tpu.vector_store %arg4[%c0_48, %c0_49, %c0_50], %57 {strides = array<i32>} : memref<1x16x128xf32, #tpu.memory_space<vmem>>, vector<1x16x128xf32>,
    return
  }
  func.func @transform_0(%arg0: i32, %arg1: i32) -> (i32, i32, i32, i32) {
    %c0_i32 = arith.constant 0 : i32
    %c0_i32_0 = arith.constant 0 : i32
    %c0_i32_1 = arith.constant 0 : i32
    return %arg0, %c0_i32, %arg1, %c0_i32_0 : i32, i32, i32, i32
  }
  func.func @transform_1(%arg0: i32, %arg1: i32) -> (i32, i32, i32) {
    %c0_i32 = arith.constant 0 : i32
    %c0_i32_0 = arith.constant 0 : i32
    %c0_i32_1 = arith.constant 0 : i32
    return %c0_i32, %arg1, %c0_i32_0 : i32, i32, i32
  }
  func.func @transform_2(%arg0: i32, %arg1: i32) -> (i32, i32, i32) {
    %c0_i32 = arith.constant 0 : i32
    %c0_i32_0 = arith.constant 0 : i32
    return %arg0, %arg1, %c0_i32 : i32, i32, i32
  }
}

</mosaic_0001>

<llo_original>
// kernel: tpu_custom_call.1
$region0: #{tpu_custom_call.1}
  #allocation0 [shape = 'u32[]', space=smem, size = 0x4, offset = 0x4, fixed_abs, tag = 'smem constant byte address 0x4 - core index']
  #allocation1 [shape = 'u32[144,128]{1,0:T(1,128)}', space=vmem, size = 0x12000, scoped, tag = 'internal scratch']
  #allocation7 [shape = 's32[]', space=sflag, size = 0x4, offset = 0, fixed_abs, tag = 'sflag constant byte address 0x0 - dummy sync flag']
  %s0 = inlined_call_operand.hbm [shape: f32[2,8,24,128], index: 0, kind: input, shape index: {}]
  %s1 = inlined_call_operand.vmem [shape: f32[8,24,1], index: 1, kind: input, shape index: {}]
  %s2 = inlined_call_operand.hbm [shape: f32[2,24,128], index: 2, kind: output, shape index: {}]
  %s3 = sld [smem:[#allocation0]]
  $region97: #{tpu_custom_call.1} parent=0
    _
  %s5 = ssub.s32 1, %s3
  %s6 = scalar_select 0, %s5, %s3
  $region1: #{tpu_custom_call.1} parent=0
    #allocation2 [shape = 'u8[131072]{0}', space=vmem, size = 0x20000, scoped, tag = 'input window, operand 0']
    #allocation3 [shape = 's32[2]{0}', space=sflag, size = 0x8, scoped, tag = 'scoped memory for tpu_custom_call.1']
    #allocation4 [shape = 's32[2]{0}', space=sflag, size = 0x8, scoped, tag = 'scoped memory for tpu_custom_call.1']
    #allocation5 [shape = 'u8[131072]{0}', space=vmem, size = 0x20000, scoped, tag = 'input window, operand 1']
    #allocation6 [shape = 'u8[16384]{0}', space=vmem, size = 0x4000, scoped, tag = 'output window, operand 0']
    %7 = vsyncpa [#allocation3], 0
    %s8 = scalar_lea.sflag [#allocation3], 1
    %9 = vsyncpa %s8, 0
    %10 = vsyncpa [#allocation4], 0
    %s11 = scalar_lea.sflag [#allocation4], 1
    %12 = vsyncpa %s11, 0
    loop: start=0, step=1, limit=6
    $region2: #{tpu_custom_call.1} parent=1 // loop_pre_header
      _
    $region3: #{tpu_custom_call.1} parent=1 // loop_header
      %s14 = sphi 0, %s18
      %p15 = scmp.ge.s32.totalorder %s14, 6
      %s21 = sphi 0, %s33
      %s22 = sphi 0, %s29
      %s23 = sphi 0, %s21
      %s24 = sphi 0, %s22
      %s25 = sphi 0, %s23
      %s26 = sphi 0, %s24
      %s38 = sphi 0, %s40
      %s41 = sphi 0, %s38
      %s42 = sphi 0, %s41
      %s58 = sphi 0, %s42
      %s64 = sphi 0, %s66
      %s67 = sphi 0, %s64
      %s68 = sphi 0, %s67
      %s84 = sphi 0, %s68
      %s92 = sphi 0, %s94
      %s95 = sphi 0, %s92
      %s96 = sphi 0, %s95
      %s112 = sphi 0, %s96
    $region4: #{tpu_custom_call.1} parent=1 // loop_header_branch
      %17 = sbr.rel (%p15) target = $region8
    $region5: #{tpu_custom_call.1} parent=1 // loop_body
      %s19 = ssub.s32 %s14, 1
      %s20 = ssub.s32 %s14, 2
      %s27 = sadd.s32 1, %s22
      %p28 = scmp.ge.s32.totalorder %s27, 2
      %s29 = scalar_select %p28, 0, %s27
      %s30 = sadd.s32 1, %s21
      %s31 = scalar_select %p28, %s30, %s21
      %p32 = scmp.ge.s32.totalorder %s31, 2
      %s33 = scalar_select %p32, 0, %s31
      %s34 = ssub.s32 %s21, %s33
      %s35 = ssub.s32 %s22, %s29
      %s36 = sor.u32 %s34, %s35
      %p37 = scmp.eq.s32.totalorder %s36, 0
      %s39 = sadd.s32 %s38, 1
      %s40 = scalar_select %p37, %s38, %s39
      %p43 = pneg %p37
      %p44 = scmp.eq.s32.totalorder %s14, 3
      %p45 = por %p43, %p44
      %p46 = scmp.ne.s32.totalorder %s38, %s41
      %p47 = scmp.eq.s32.totalorder %s14, 0
      %p48 = por %p46, %p47
      %p49 = scmp.ne.s32.totalorder %s38, %s41
      %p50 = scmp.eq.s32.totalorder %s19, 3
      %p51 = por %p49, %p50
      %p52 = scmp.ne.s32.totalorder %s41, %s42
      %p53 = scmp.eq.s32.totalorder %s19, 0
      %p54 = por %p52, %p53
      %p55 = scmp.ne.s32.totalorder %s41, %s42
      %p56 = scmp.eq.s32.totalorder %s20, 3
      %p57 = por %p55, %p56
      %p59 = scmp.ne.s32.totalorder %s42, %s58
      %p60 = scmp.eq.s32.totalorder %s20, 0
      %p61 = por %p59, %p60
      %s62 = ssub.s32 %s22, %s29
      %p63 = scmp.eq.s32.totalorder %s62, 0
      %s65 = sadd.s32 %s64, 1
      %s66 = scalar_select %p63, %s64, %s65
      %p69 = pneg %p63
      %p70 = scmp.eq.s32.totalorder %s14, 3
      %p71 = por %p69, %p70
      %p72 = scmp.ne.s32.totalorder %s64, %s67
      %p73 = scmp.eq.s32.totalorder %s14, 0
      %p74 = por %p72, %p73
      %p75 = scmp.ne.s32.totalorder %s64, %s67
      %p76 = scmp.eq.s32.totalorder %s19, 3
      %p77 = por %p75, %p76
      %p78 = scmp.ne.s32.totalorder %s67, %s68
      %p79 = scmp.eq.s32.totalorder %s19, 0
      %p80 = por %p78, %p79
      %p81 = scmp.ne.s32.totalorder %s67, %s68
      %p82 = scmp.eq.s32.totalorder %s20, 3
      %p83 = por %p81, %p82
      %p85 = scmp.ne.s32.totalorder %s68, %s84
      %p86 = scmp.eq.s32.totalorder %s20, 0
      %p87 = por %p85, %p86
      %s88 = ssub.s32 %s21, %s33
      %s89 = ssub.s32 %s22, %s29
      %s90 = sor.u32 %s88, %s89
      %p91 = scmp.eq.s32.totalorder %s90, 0
      %s93 = sadd.s32 %s92, 1
      %s94 = scalar_select %p91, %s92, %s93
      %p97 = pneg %p91
      %p98 = scmp.eq.s32.totalorder %s14, 3
      %p99 = por %p97, %p98
      %p100 = scmp.ne.s32.totalorder %s92, %s95
      %p101 = scmp.eq.s32.totalorder %s14, 0
      %p102 = por %p100, %p101
      %p103 = scmp.ne.s32.totalorder %s92, %s95
      %p104 = scmp.eq.s32.totalorder %s19, 3
      %p105 = por %p103, %p104
      %p106 = scmp.ne.s32.totalorder %s95, %s96
      %p107 = scmp.eq.s32.totalorder %s19, 0
      %p108 = por %p106, %p107
      %p109 = scmp.ne.s32.totalorder %s95, %s96
      %p110 = scmp.eq.s32.totalorder %s20, 3
      %p111 = por %p109, %p110
      %p113 = scmp.ne.s32.totalorder %s96, %s112
      %p114 = scmp.eq.s32.totalorder %s20, 0
      %p115 = por %p113, %p114
      %p116 = scmp.le.s32.totalorder 1, %s14
      %p117 = scmp.lt.s32.totalorder %s14, 5
      %p118 = pnand %p116, %p117
      %p119 = pneg %p118
      // Predicated region
      $region9: #{tpu_custom_call.1} parent=5 // pred_check
        _
      $region10: #{tpu_custom_call.1} parent=5 // pred_check_branch
        %121 = sbr.rel (%p118) target = $region12
      $region11: #{tpu_custom_call.1} parent=5 // pred_region
        %s122 = ssub.s32 %s14, 1
      $region12: #{tpu_custom_call.1} parent=5 // pred_fallthru
        _
      %p123 = scmp.lt.s32.totalorder %s14, 4
      // Predicated region
      $region13: #{tpu_custom_call.1} parent=5 // pred_check
        %p124 = pneg %p123
      $region14: #{tpu_custom_call.1} parent=5 // pred_check_branch
        %126 = sbr.rel (%p124) target = $region16
      $region15: #{tpu_custom_call.1} parent=5 // pred_region
        // Predicated region
        $region17: #{tpu_custom_call.1} parent=15 // pred_check
          %p127 = pneg %p48
        $region18: #{tpu_custom_call.1} parent=15 // pred_check_branch
          %129 = sbr.rel (%p127) target = $region20
        $region19: #{tpu_custom_call.1} parent=15 // pred_region
          #allocation8 [shape = 'u32[6]{0}', space=smem, size = 0x18, scoped, tag = 'DMA stride descriptor']
          %s130 = sand.u32 %s38, 1
          %s131 = scalar_lea.sflag [#allocation3], %s130
          %s132 = sand.u32 %s38, 1
          %s133 = smul.addr %s132, 128
          %s134 = scalar_lea.vmem [#allocation2], %s133
          %s135 = smul.u32 2, %s22
          %s136 = ssub.s32 3, %s135
          %p137 = scmp.lt.s32.totalorder %s136, 2
          %s138 = scalar_select %p137, %s136, 2
          %s139 = smul.u32 1024, %s138
          %s141 = ssub.s32 2048, %s139
          %142 = vsyncadd %s131, %s141
          %p143 = scmp.ne.s32.totalorder 0, %s139
          %s144 = smul.addr %s21, 24
          %s145 = sadd.s32 %s135, %s144
          %s146 = smul.addr %s145, 128
          %s147 = scalar_lea.hbm %s0, %s146
          %s148 = smul.u32 8, %s138
          %s149 = smul.u32 %s148, 8
          %s151 = sshll.u32 1, 14
          %s152 = sxor.u32 4294967295, %s151
          %s154 = sld [smem:[#allocation0]]
          %s155 = sadd.s32 2, %s154
          %s157 = sshll.u32 7, 26
          %s158 = sxor.u32 4294967295, %s157
          %s159 = sand.u32 0, %s158
          %s160 = sshll.u32 %s155, 26
          %s161 = sor.u32 %s159, %s160
          %s162 = sshll.u32 %s134, 4
          %s163 = int_to_ptr.vmem [resolvable:$true] %s162
          %s164 = sshll.u32 %s149, 4
          %169 = sst [smem:[#allocation8]] 384
          %s170 = scalar_lea.smem [#allocation8], 1
          %171 = sst [smem:[%s170]] 256
          %s172 = scalar_lea.smem [#allocation8], 2
          %173 = sst [smem:[%s172]] %s138
          %s174 = scalar_lea.smem [#allocation8], 3
          %175 = sst [smem:[%s174]] 128
          %s176 = scalar_lea.smem [#allocation8], 4
          %177 = sst [smem:[%s176]] 128
          %s178 = scalar_lea.smem [#allocation8], 5
          %179 = sst [smem:[%s178]] 8
          %181 = dma.general (%p143), %s147, %s164, %s163, %s131, [#allocation7], [#allocation8], %s161, 0
        $region20: #{tpu_custom_call.1} parent=15 // pred_fallthru
          _
        // Predicated region
        $region21: #{tpu_custom_call.1} parent=15 // pred_check
          %p182 = pneg %p74
        $region22: #{tpu_custom_call.1} parent=15 // pred_check_branch
          %184 = sbr.rel (%p182) target = $region24
        $region23: #{tpu_custom_call.1} parent=15 // pred_region
          %s185 = sand.u32 %s64, 1
          %s186 = sand.u32 %s64, 1
          %s187 = smul.addr %s186, 128
          %s188 = scalar_lea.vmem [#allocation5], %s187
          %s189 = smul.u32 2, %s22
          %s190 = ssub.s32 3, %s189
          %p191 = scmp.lt.s32.totalorder %s190, 2
          %s192 = scalar_select %p191, %s190, 2
          %s193 = smul.u32 1024, %s192
          %p194 = scmp.ne.s32.totalorder 0, %s193
          %s195 = smul.addr %s189, 8
          %s196 = scalar_lea.vmem %s1, %s195
          // Predicated region
          $region25: #{tpu_custom_call.1} parent=23 // pred_check
            %p197 = pneg %p194
          $region26: #{tpu_custom_call.1} parent=23 // pred_check_branch
            %199 = sbr.rel (%p197) target = $region28
          $region27: #{tpu_custom_call.1} parent=23 // pred_region
            // Predicated region
            $region29: #{tpu_custom_call.1} parent=27 // pred_check
              _
            $region30: #{tpu_custom_call.1} parent=27 // pred_check_branch
              %201 = sbr.rel (0) target = $region32
            $region31: #{tpu_custom_call.1} parent=27 // pred_region
              // Predicated region
              $region51: #{tpu_custom_call.1} parent=31 // pred_check
                _
              $region52: #{tpu_custom_call.1} parent=31 // pred_check_branch
                %294 = sbr.rel (0) target = $region54
              $region53: #{tpu_custom_call.1} parent=31 // pred_region
                %s295 = sshrl.u32 %s192, 1
                // While loop
                $region55: #{tpu_custom_call.1} parent=53 // loop_pre_header
                  _
                $region56: #{tpu_custom_call.1} parent=53 // loop_header
                  %s297 = sphi 0, %s299
                  %p298 = scmp.ge.s32.totalorder %s297, %s295
                  %s302 = sphi 0, %s339
                  %s303 = sphi %s196, %s342
                  %s304 = sphi %s188, %s343
                $region57: #{tpu_custom_call.1} parent=53 // loop_header_branch
                  %301 = sbr.rel (%p298) target = $region61
                $region58: #{tpu_custom_call.1} parent=53 // loop_body
                  %v305 = vld [vmem:[%s303] sm:$0xff]
                  %306 = vst [vmem:[%s304] sm:$0xff] %v305
                  %v307 = vld [vmem:[%s303 + $0x8] sm:$0xff]
                  %308 = vst [vmem:[%s304 + $0x8] sm:$0xff] %v307
                  %v309 = vld [vmem:[%s303 + $0x18] sm:$0xff]
                  %310 = vst [vmem:[%s304 + $0x10] sm:$0xff] %v309
                  %v311 = vld [vmem:[%s303 + $0x20] sm:$0xff]
                  %312 = vst [vmem:[%s304 + $0x18] sm:$0xff] %v311
                  %v313 = vld [vmem:[%s303 + $0x30] sm:$0xff]
                  %314 = vst [vmem:[%s304 + $0x20] sm:$0xff] %v313
                  %v315 = vld [vmem:[%s303 + $0x38] sm:$0xff]
                  %316 = vst [vmem:[%s304 + $0x28] sm:$0xff] %v315
                  %v317 = vld [vmem:[%s303 + $0x48] sm:$0xff]
                  %318 = vst [vmem:[%s304 + $0x30] sm:$0xff] %v317
                  %v319 = vld [vmem:[%s303 + $0x50] sm:$0xff]
                  %320 = vst [vmem:[%s304 + $0x38] sm:$0xff] %v319
                  %v321 = vld [vmem:[%s303 + $0x60] sm:$0xff]
                  %322 = vst [vmem:[%s304 + $0x40] sm:$0xff] %v321
                  %v323 = vld [vmem:[%s303 + $0x68] sm:$0xff]
                  %324 = vst [vmem:[%s304 + $0x48] sm:$0xff] %v323
                  %v325 = vld [vmem:[%s303 + $0x78] sm:$0xff]
                  %326 = vst [vmem:[%s304 + $0x50] sm:$0xff] %v325
                  %v327 = vld [vmem:[%s303 + $0x80] sm:$0xff]
                  %328 = vst [vmem:[%s304 + $0x58] sm:$0xff] %v327
                  %v329 = vld [vmem:[%s303 + $0x90] sm:$0xff]
                  %330 = vst [vmem:[%s304 + $0x60] sm:$0xff] %v329
                  %v331 = vld [vmem:[%s303 + $0x98] sm:$0xff]
                  %332 = vst [vmem:[%s304 + $0x68] sm:$0xff] %v331
                  %v333 = vld [vmem:[%s303 + $0xa8] sm:$0xff]
                  %334 = vst [vmem:[%s304 + $0x70] sm:$0xff] %v333
                  %v335 = vld [vmem:[%s303 + $0xb0] sm:$0xff]
                  %336 = vst [vmem:[%s304 + $0x78] sm:$0xff] %v335
                  %s337 = sadd.s32 1, %s302
                  %p338 = scmp.ge.s32.totalorder %s337, %s295
                  %s339 = scalar_select %p338, 0, %s337
                  %s340 = smul.u32 %s339, 16
                  %s341 = smul.u32 %s339, 16
                  %s342 = scalar_lea.vmem %s196, %s340
                  %s343 = scalar_lea.vmem %s188, %s341 [#allocation5]
                $region59: #{tpu_custom_call.1} parent=53 // loop_footer
                  %s299 = sadd.s32 %s297, 1
                $region60: #{tpu_custom_call.1} parent=53 // loop_footer_branch
                  %296 = sbr.rel target = $region56
                $region61: #{tpu_custom_call.1} parent=53 // loop_exit
                  _
                %s344 = sshrl.u32 %s192, 1
                %s345 = sand.u32 %s192, 1
                %s346 = smul.u32 %s344, 2
                %s347 = smul.u32 8, %s346
                %s348 = scalar_lea.vmem %s196, %s347
                %s349 = smul.u32 8, %s346
                %s350 = scalar_lea.vmem %s188, %s349 [#allocation5]
                // While loop
                $region62: #{tpu_custom_call.1} parent=53 // loop_pre_header
                  _
                $region63: #{tpu_custom_call.1} parent=53 // loop_header
                  %s352 = sphi 0, %s354
                  %p353 = scmp.ge.s32.totalorder %s352, %s345
                  %s357 = sphi 0, %s378
                  %s358 = sphi %s348, %s381
                  %s359 = sphi %s350, %s382
                $region64: #{tpu_custom_call.1} parent=53 // loop_header_branch
                  %356 = sbr.rel (%p353) target = $region68
                $region65: #{tpu_custom_call.1} parent=53 // loop_body
                  %v360 = vld [vmem:[%s358] sm:$0xff]
                  %361 = vst [vmem:[%s359] sm:$0xff] %v360
                  %v362 = vld [vmem:[%s358 + $0x18] sm:$0xff]
                  %363 = vst [vmem:[%s359 + $0x10] sm:$0xff] %v362
                  %v364 = vld [vmem:[%s358 + $0x30] sm:$0xff]
                  %365 = vst [vmem:[%s359 + $0x20] sm:$0xff] %v364
                  %v366 = vld [vmem:[%s358 + $0x48] sm:$0xff]
                  %367 = vst [vmem:[%s359 + $0x30] sm:$0xff] %v366
                  %v368 = vld [vmem:[%s358 + $0x60] sm:$0xff]
                  %369 = vst [vmem:[%s359 + $0x40] sm:$0xff] %v368
                  %v370 = vld [vmem:[%s358 + $0x78] sm:$0xff]
                  %371 = vst [vmem:[%s359 + $0x50] sm:$0xff] %v370
                  %v372 = vld [vmem:[%s358 + $0x90] sm:$0xff]
                  %373 = vst [vmem:[%s359 + $0x60] sm:$0xff] %v372
                  %v374 = vld [vmem:[%s358 + $0xa8] sm:$0xff]
                  %375 = vst [vmem:[%s359 + $0x70] sm:$0xff] %v374
                  %s376 = sadd.s32 1, %s357
                  %p377 = scmp.ge.s32.totalorder %s376, %s345
                  %s378 = scalar_select %p377, 0, %s376
                  %s379 = smul.u32 %s378, 8
                  %s380 = smul.u32 %s378, 8
                  %s381 = scalar_lea.vmem %s348, %s379
                  %s382 = scalar_lea.vmem %s350, %s380 [#allocation5]
                $region66: #{tpu_custom_call.1} parent=53 // loop_footer
                  %s354 = sadd.s32 %s352, 1
                $region67: #{tpu_custom_call.1} parent=53 // loop_footer_branch
                  %351 = sbr.rel target = $region63
                $region68: #{tpu_custom_call.1} parent=53 // loop_exit
                  _
              $region54: #{tpu_custom_call.1} parent=31 // pred_fallthru
                _
              // Predicated region
              $region69: #{tpu_custom_call.1} parent=31 // pred_check
                _
              $region70: #{tpu_custom_call.1} parent=31 // pred_check_branch
                %384 = sbr.rel target = $region72
              $region71: #{tpu_custom_call.1} parent=31 // pred_region
                _
              $region72: #{tpu_custom_call.1} parent=31 // pred_fallthru
                _
            $region32: #{tpu_custom_call.1} parent=27 // pred_fallthru
              _
            // Predicated region
            $region33: #{tpu_custom_call.1} parent=27 // pred_check
              _
            $region34: #{tpu_custom_call.1} parent=27 // pred_check_branch
              %203 = sbr.rel target = $region36
            $region35: #{tpu_custom_call.1} parent=27 // pred_region
              %s205 = sshrl.u32 %s192, 1
              // While loop
              $region37: #{tpu_custom_call.1} parent=35 // loop_pre_header
                _
              $region38: #{tpu_custom_call.1} parent=35 // loop_header
                %s207 = sphi 0, %s209
                %p208 = scmp.ge.s32.totalorder %s207, %s205
                %s212 = sphi 0, %s249
                %s213 = sphi %s196, %s252
                %s214 = sphi %s188, %s253
              $region39: #{tpu_custom_call.1} parent=35 // loop_header_branch
                %211 = sbr.rel (%p208) target = $region43
              $region40: #{tpu_custom_call.1} parent=35 // loop_body
                %v215 = vld [vmem:[%s213] sm:$0xff]
                %216 = vst [vmem:[%s214] sm:$0xff] %v215
                %v217 = vld [vmem:[%s213 + $0x8] sm:$0xff]
                %218 = vst [vmem:[%s214 + $0x8] sm:$0xff] %v217
                %v219 = vld [vmem:[%s213 + $0x18] sm:$0xff]
                %220 = vst [vmem:[%s214 + $0x10] sm:$0xff] %v219
                %v221 = vld [vmem:[%s213 + $0x20] sm:$0xff]
                %222 = vst [vmem:[%s214 + $0x18] sm:$0xff] %v221
                %v223 = vld [vmem:[%s213 + $0x30] sm:$0xff]
                %224 = vst [vmem:[%s214 + $0x20] sm:$0xff] %v223
                %v225 = vld [vmem:[%s213 + $0x38] sm:$0xff]
                %226 = vst [vmem:[%s214 + $0x28] sm:$0xff] %v225
                %v227 = vld [vmem:[%s213 + $0x48] sm:$0xff]
                %228 = vst [vmem:[%s214 + $0x30] sm:$0xff] %v227
                %v229 = vld [vmem:[%s213 + $0x50] sm:$0xff]
                %230 = vst [vmem:[%s214 + $0x38] sm:$0xff] %v229
                %v231 = vld [vmem:[%s213 + $0x60] sm:$0xff]
                %232 = vst [vmem:[%s214 + $0x40] sm:$0xff] %v231
                %v233 = vld [vmem:[%s213 + $0x68] sm:$0xff]
                %234 = vst [vmem:[%s214 + $0x48] sm:$0xff] %v233
                %v235 = vld [vmem:[%s213 + $0x78] sm:$0xff]
                %236 = vst [vmem:[%s214 + $0x50] sm:$0xff] %v235
                %v237 = vld [vmem:[%s213 + $0x80] sm:$0xff]
                %238 = vst [vmem:[%s214 + $0x58] sm:$0xff] %v237
                %v239 = vld [vmem:[%s213 + $0x90] sm:$0xff]
                %240 = vst [vmem:[%s214 + $0x60] sm:$0xff] %v239
                %v241 = vld [vmem:[%s213 + $0x98] sm:$0xff]
                %242 = vst [vmem:[%s214 + $0x68] sm:$0xff] %v241
                %v243 = vld [vmem:[%s213 + $0xa8] sm:$0xff]
                %244 = vst [vmem:[%s214 + $0x70] sm:$0xff] %v243
                %v245 = vld [vmem:[%s213 + $0xb0] sm:$0xff]
                %246 = vst [vmem:[%s214 + $0x78] sm:$0xff] %v245
                %s247 = sadd.s32 1, %s212
                %p248 = scmp.ge.s32.totalorder %s247, %s205
                %s249 = scalar_select %p248, 0, %s247
                %s250 = smul.u32 %s249, 16
                %s251 = smul.u32 %s249, 16
                %s252 = scalar_lea.vmem %s196, %s250
                %s253 = scalar_lea.vmem %s188, %s251 [#allocation5]
              $region41: #{tpu_custom_call.1} parent=35 // loop_footer
                %s209 = sadd.s32 %s207, 1
              $region42: #{tpu_custom_call.1} parent=35 // loop_footer_branch
                %206 = sbr.rel target = $region38
              $region43: #{tpu_custom_call.1} parent=35 // loop_exit
                _
              %s254 = sshrl.u32 %s192, 1
              %s255 = sand.u32 %s192, 1
              %s256 = smul.u32 %s254, 2
              %s257 = smul.u32 8, %s256
              %s258 = scalar_lea.vmem %s196, %s257
              %s259 = smul.u32 8, %s256
              %s260 = scalar_lea.vmem %s188, %s259 [#allocation5]
              // While loop
              $region44: #{tpu_custom_call.1} parent=35 // loop_pre_header
                _
              $region45: #{tpu_custom_call.1} parent=35 // loop_header
                %s262 = sphi 0, %s264
                %p263 = scmp.ge.s32.totalorder %s262, %s255
                %s267 = sphi 0, %s288
                %s268 = sphi %s258, %s291
                %s269 = sphi %s260, %s292
              $region46: #{tpu_custom_call.1} parent=35 // loop_header_branch
                %266 = sbr.rel (%p263) target = $region50
              $region47: #{tpu_custom_call.1} parent=35 // loop_body
                %v270 = vld [vmem:[%s268] sm:$0xff]
                %271 = vst [vmem:[%s269] sm:$0xff] %v270
                %v272 = vld [vmem:[%s268 + $0x18] sm:$0xff]
                %273 = vst [vmem:[%s269 + $0x10] sm:$0xff] %v272
                %v274 = vld [vmem:[%s268 + $0x30] sm:$0xff]
                %275 = vst [vmem:[%s269 + $0x20] sm:$0xff] %v274
                %v276 = vld [vmem:[%s268 + $0x48] sm:$0xff]
                %277 = vst [vmem:[%s269 + $0x30] sm:$0xff] %v276
                %v278 = vld [vmem:[%s268 + $0x60] sm:$0xff]
                %279 = vst [vmem:[%s269 + $0x40] sm:$0xff] %v278
                %v280 = vld [vmem:[%s268 + $0x78] sm:$0xff]
                %281 = vst [vmem:[%s269 + $0x50] sm:$0xff] %v280
                %v282 = vld [vmem:[%s268 + $0x90] sm:$0xff]
                %283 = vst [vmem:[%s269 + $0x60] sm:$0xff] %v282
                %v284 = vld [vmem:[%s268 + $0xa8] sm:$0xff]
                %285 = vst [vmem:[%s269 + $0x70] sm:$0xff] %v284
                %s286 = sadd.s32 1, %s267
                %p287 = scmp.ge.s32.totalorder %s286, %s255
                %s288 = scalar_select %p287, 0, %s286
                %s289 = smul.u32 %s288, 8
                %s290 = smul.u32 %s288, 8
                %s291 = scalar_lea.vmem %s258, %s289
                %s292 = scalar_lea.vmem %s260, %s290 [#allocation5]
              $region48: #{tpu_custom_call.1} parent=35 // loop_footer
                %s264 = sadd.s32 %s262, 1
              $region49: #{tpu_custom_call.1} parent=35 // loop_footer_branch
                %261 = sbr.rel target = $region45
              $region50: #{tpu_custom_call.1} parent=35 // loop_exit
                _
            $region36: #{tpu_custom_call.1} parent=27 // pred_fallthru
              _
          $region28: #{tpu_custom_call.1} parent=23 // pred_fallthru
            _
          %385 = vnop
        $region24: #{tpu_custom_call.1} parent=15 // pred_fallthru
          _
      $region16: #{tpu_custom_call.1} parent=5 // pred_fallthru
        _
      %p386 = scmp.le.s32.totalorder 1, %s14
      %p387 = scmp.lt.s32.totalorder %s14, 5
      %p388 = pnand %p386, %p387
      %p389 = pneg %p388
      // Predicated region
      $region73: #{tpu_custom_call.1} parent=5 // pred_check
        _
      $region74: #{tpu_custom_call.1} parent=5 // pred_check_branch
        %391 = sbr.rel (%p388) target = $region76
      $region75: #{tpu_custom_call.1} parent=5 // pred_region
        %s392 = ssub.s32 %s14, 1
        %s393 = sand.u32 %s41, 1
        %s394 = scalar_lea.sflag [#allocation3], %s393
        %s395 = sand.u32 %s41, 1
        %s396 = smul.addr %s395, 128
        %s397 = scalar_lea.vmem [#allocation2], %s396
        // Predicated region
        $region77: #{tpu_custom_call.1} parent=75 // pred_check
          %p398 = pneg %p54
        $region78: #{tpu_custom_call.1} parent=75 // pred_check_branch
          %400 = sbr.rel (%p398) target = $region80
        $region79: #{tpu_custom_call.1} parent=75 // pred_region
          %401 = dma.done %s394, 2048
        $region80: #{tpu_custom_call.1} parent=75 // pred_fallthru
          _
        %s402 = sand.u32 %s67, 1
        %s403 = sand.u32 %s67, 1
        %s404 = smul.addr %s403, 128
        %s405 = scalar_lea.vmem [#allocation5], %s404
        // Predicated region
        $region81: #{tpu_custom_call.1} parent=75 // pred_check
          %p406 = pneg %p80
        $region82: #{tpu_custom_call.1} parent=75 // pred_check_branch
          %408 = sbr.rel (%p406) target = $region84
        $region83: #{tpu_custom_call.1} parent=75 // pred_region
          _
        $region84: #{tpu_custom_call.1} parent=75 // pred_fallthru
          _
        %s409 = sand.u32 %s41, 1
        %s410 = scalar_lea.sflag [#allocation3], %s409
        %s411 = sand.u32 %s41, 1
        %s412 = smul.addr %s411, 128
        %s413 = scalar_lea.vmem [#allocation2], %s412
        %p414 = pneg %p54
        %p415 = pneg %p51
        %s416 = sand.u32 %s67, 1
        %s417 = sand.u32 %s67, 1
        %s418 = smul.addr %s417, 128
        %s419 = scalar_lea.vmem [#allocation5], %s418
        %p420 = pneg %p80
        %p421 = pneg %p77
        %p422 = pneg %p108
        %p423 = pneg %p105
        %s424 = sand.u32 %s95, 1
        %s425 = scalar_lea.sflag [#allocation4], %s424
        %s426 = sand.u32 %s95, 1
        %s427 = smul.addr %s426, 16
        %s428 = scalar_lea.vmem [#allocation6], %s427
        %s429 = smul.u32 2, %s24
        %s430 = ssub.s32 3, %s429
        %p431 = scmp.lt.s32.totalorder %s430, 2
        %s432 = scalar_select %p431, %s430, 2
        %s433 = smul.u32 1024, %s432
        %s434 = smul.u32 2, %s24
        %s435 = ssub.s32 3, %s434
        %p436 = scmp.lt.s32.totalorder %s435, 2
        %s437 = scalar_select %p436, %s435, 2
        %s438 = smul.u32 1024, %s437
        %s439 = smul.u32 2, %s24
        %s440 = ssub.s32 3, %s439
        %p441 = scmp.lt.s32.totalorder %s440, 2
        %s442 = scalar_select %p441, %s440, 2
        %s443 = smul.u32 128, %s442
        %v444 = vld [vmem:[%s397] sm:$0xff]
        %v445 = vld [vmem:[%s397 + $0x8] sm:$0xff]
        %v446 = vld [vmem:[%s405] sm:$0xff]
        %v447 = vld [vmem:[%s405 + $0x8] sm:$0xff]
        %449 = vset.pattern.permute.xlu0 0
        %450 = vperm.xlu0 %449, %v446
        %v451 = vpop.permute.xlu0 %450
        %454 = vset.pattern.permute.xlu0 0
        %455 = vperm.xlu0 %454, %v447
        %v456 = vpop.permute.xlu0 %455
        %v458 = vmul.f32 %v444, %v451
        %v459 = vmul.f32 %v445, %v456
        %s460 = scalar_lea.vmem %s397, 16 [#allocation2]
        %v461 = vld [vmem:[%s460] sm:$0xff]
        %v462 = vld [vmem:[%s460 + $0x8] sm:$0xff]
        %s463 = scalar_lea.vmem %s405, 16 [#allocation5]
        %v464 = vld [vmem:[%s463] sm:$0xff]
        %v465 = vld [vmem:[%s463 + $0x8] sm:$0xff]
        %467 = vset.pattern.permute.xlu0 0
        %468 = vperm.xlu0 %467, %v464
        %v469 = vpop.permute.xlu0 %468
        %472 = vset.pattern.permute.xlu0 0
        %473 = vperm.xlu0 %472, %v465
        %v474 = vpop.permute.xlu0 %473
        %v476 = vmul.f32 %v461, %v469
        %v477 = vmul.f32 %v462, %v474
        %v478 = vadd.f32 %v458, %v476
        %v479 = vadd.f32 %v459, %v477
        %s480 = scalar_lea.vmem %s397, 32 [#allocation2]
        %v481 = vld [vmem:[%s480] sm:$0xff]
        %v482 = vld [vmem:[%s480 + $0x8] sm:$0xff]
        %s483 = scalar_lea.vmem %s405, 32 [#allocation5]
        %v484 = vld [vmem:[%s483] sm:$0xff]
        %v485 = vld [vmem:[%s483 + $0x8] sm:$0xff]
        %487 = vset.pattern.permute.xlu0 0
        %488 = vperm.xlu0 %487, %v484
        %v489 = vpop.permute.xlu0 %488
        %492 = vset.pattern.permute.xlu0 0
        %493 = vperm.xlu0 %492, %v485
        %v494 = vpop.permute.xlu0 %493
        %v496 = vmul.f32 %v481, %v489
        %v497 = vmul.f32 %v482, %v494
        %v498 = vadd.f32 %v478, %v496
        %v499 = vadd.f32 %v479, %v497
        %s500 = scalar_lea.vmem %s397, 48 [#allocation2]
        %v501 = vld [vmem:[%s500] sm:$0xff]
        %v502 = vld [vmem:[%s500 + $0x8] sm:$0xff]
        %s503 = scalar_lea.vmem %s405, 48 [#allocation5]
        %v504 = vld [vmem:[%s503] sm:$0xff]
        %v505 = vld [vmem:[%s503 + $0x8] sm:$0xff]
        %507 = vset.pattern.permute.xlu0 0
        %508 = vperm.xlu0 %507, %v504
        %v509 = vpop.permute.xlu0 %508
        %512 = vset.pattern.permute.xlu0 0
        %513 = vperm.xlu0 %512, %v505
        %v514 = vpop.permute.xlu0 %513
        %v516 = vmul.f32 %v501, %v509
        %v517 = vmul.f32 %v502, %v514
        %v518 = vadd.f32 %v498, %v516
        %v519 = vadd.f32 %v499, %v517
        %s520 = scalar_lea.vmem %s397, 64 [#allocation2]
        %v521 = vld [vmem:[%s520] sm:$0xff]
        %v522 = vld [vmem:[%s520 + $0x8] sm:$0xff]
        %s523 = scalar_lea.vmem %s405, 64 [#allocation5]
        %v524 = vld [vmem:[%s523] sm:$0xff]
        %v525 = vld [vmem:[%s523 + $0x8] sm:$0xff]
        %527 = vset.pattern.permute.xlu0 0
        %528 = vperm.xlu0 %527, %v524
        %v529 = vpop.permute.xlu0 %528
        %532 = vset.pattern.permute.xlu0 0
        %533 = vperm.xlu0 %532, %v525
        %v534 = vpop.permute.xlu0 %533
        %v536 = vmul.f32 %v521, %v529
        %v537 = vmul.f32 %v522, %v534
        %v538 = vadd.f32 %v518, %v536
        %v539 = vadd.f32 %v519, %v537
        %s540 = scalar_lea.vmem %s397, 80 [#allocation2]
        %v541 = vld [vmem:[%s540] sm:$0xff]
        %v542 = vld [vmem:[%s540 + $0x8] sm:$0xff]
        %s543 = scalar_lea.vmem %s405, 80 [#allocation5]
        %v544 = vld [vmem:[%s543] sm:$0xff]
        %v545 = vld [vmem:[%s543 + $0x8] sm:$0xff]
        %547 = vset.pattern.permute.xlu0 0
        %548 = vperm.xlu0 %547, %v544
        %v549 = vpop.permute.xlu0 %548
        %552 = vset.pattern.permute.xlu0 0
        %553 = vperm.xlu0 %552, %v545
        %v554 = vpop.permute.xlu0 %553
        %v556 = vmul.f32 %v541, %v549
        %v557 = vmul.f32 %v542, %v554
        %v558 = vadd.f32 %v538, %v556
        %v559 = vadd.f32 %v539, %v557
        %s560 = scalar_lea.vmem %s397, 96 [#allocation2]
        %v561 = vld [vmem:[%s560] sm:$0xff]
        %v562 = vld [vmem:[%s560 + $0x8] sm:$0xff]
        %s563 = scalar_lea.vmem %s405, 96 [#allocation5]
        %v564 = vld [vmem:[%s563] sm:$0xff]
        %v565 = vld [vmem:[%s563 + $0x8] sm:$0xff]
        %567 = vset.pattern.permute.xlu0 0
        %568 = vperm.xlu0 %567, %v564
        %v569 = vpop.permute.xlu0 %568
        %572 = vset.pattern.permute.xlu0 0
        %573 = vperm.xlu0 %572, %v565
        %v574 = vpop.permute.xlu0 %573
        %v576 = vmul.f32 %v561, %v569
        %v577 = vmul.f32 %v562, %v574
        %v578 = vadd.f32 %v558, %v576
        %v579 = vadd.f32 %v559, %v577
        %s580 = scalar_lea.vmem %s397, 112 [#allocation2]
        %v581 = vld [vmem:[%s580] sm:$0xff]
        %v582 = vld [vmem:[%s580 + $0x8] sm:$0xff]
        %s583 = scalar_lea.vmem %s405, 112 [#allocation5]
        %v584 = vld [vmem:[%s583] sm:$0xff]
        %v585 = vld [vmem:[%s583 + $0x8] sm:$0xff]
        %587 = vset.pattern.permute.xlu0 0
        %588 = vperm.xlu0 %587, %v584
        %v589 = vpop.permute.xlu0 %588
        %592 = vset.pattern.permute.xlu0 0
        %593 = vperm.xlu0 %592, %v585
        %v594 = vpop.permute.xlu0 %593
        %v596 = vmul.f32 %v581, %v589
        %v597 = vmul.f32 %v582, %v594
        %v598 = vadd.f32 %v578, %v596
        %v599 = vadd.f32 %v579, %v597
        %600 = vst [vmem:[%s428] sm:$0xff] %v598
        %601 = vst [vmem:[%s428 + $0x8] sm:$0xff] %v599
        %s602 = sand.u32 %s95, 1
        %s603 = scalar_lea.sflag [#allocation4], %s602
        %s604 = sand.u32 %s95, 1
        %s605 = smul.addr %s604, 16
        %s606 = scalar_lea.vmem [#allocation6], %s605
        // Predicated region
        $region85: #{tpu_custom_call.1} parent=75 // pred_check
          %p607 = pneg %p105
        $region86: #{tpu_custom_call.1} parent=75 // pred_check_branch
          %609 = sbr.rel (%p607) target = $region88
        $region87: #{tpu_custom_call.1} parent=75 // pred_region
          %s610 = smul.u32 2, %s24
          %s611 = ssub.s32 3, %s610
          %p612 = scmp.lt.s32.totalorder %s611, 2
          %s613 = scalar_select %p612, %s611, 2
          %s614 = smul.u32 128, %s613
          %s616 = ssub.s32 256, %s614
          %617 = vsyncadd %s603, %s616
          %p618 = scmp.ne.s32.totalorder 0, %s614
          %s619 = smul.addr %s23, 3
          %s620 = sadd.s32 %s610, %s619
          %s621 = smul.addr %s620, 128
          %s622 = scalar_lea.hbm %s2, %s621
          %s623 = smul.u32 8, %s613
          %s624 = sshll.u32 %s606, 4
          %s625 = int_to_ptr.vmem [resolvable:$true] %s624
          %s626 = sshll.u32 %s623, 4
          %630 = dma.vmem_to_hbm [thread:$0]  (%p618), %s625, %s626, %s622, %s603, 128, 128, 8
        $region88: #{tpu_custom_call.1} parent=75 // pred_fallthru
          _
      $region76: #{tpu_custom_call.1} parent=5 // pred_fallthru
        _
      %p631 = scmp.le.s32.totalorder 2, %s14
      // Predicated region
      $region89: #{tpu_custom_call.1} parent=5 // pred_check
        %p632 = pneg %p631
      $region90: #{tpu_custom_call.1} parent=5 // pred_check_branch
        %634 = sbr.rel (%p632) target = $region92
      $region91: #{tpu_custom_call.1} parent=5 // pred_region
        %s635 = ssub.s32 %s14, 2
        // Predicated region
        $region93: #{tpu_custom_call.1} parent=91 // pred_check
          %p636 = pneg %p111
        $region94: #{tpu_custom_call.1} parent=91 // pred_check_branch
          %638 = sbr.rel (%p636) target = $region96
        $region95: #{tpu_custom_call.1} parent=91 // pred_region
          %s639 = sand.u32 %s96, 1
          %s640 = scalar_lea.sflag [#allocation4], %s639
          %s641 = sand.u32 %s96, 1
          %s642 = smul.addr %s641, 16
          %s643 = scalar_lea.vmem [#allocation6], %s642
          %644 = dma.done %s640, 256
        $region96: #{tpu_custom_call.1} parent=91 // pred_fallthru
          _
      $region92: #{tpu_custom_call.1} parent=5 // pred_fallthru
        _
    $region6: #{tpu_custom_call.1} parent=1 // loop_footer
      %s18 = sadd.s32 1, %s14
    $region7: #{tpu_custom_call.1} parent=1 // loop_footer_branch
      %13 = sbr.rel target = $region3
    $region8: #{tpu_custom_call.1} parent=1 // loop_exit
      _
    %645 = vsyncpa [#allocation3], 1
    %s646 = scalar_lea.sflag [#allocation3], 1
    %647 = vsyncpa %s646, 1
    %648 = vsyncpa [#allocation4], 1
    %s649 = scalar_lea.sflag [#allocation4], 1
    %650 = vsyncpa %s649, 1

</llo_original>
